<compile_context>
chip_gen: v7x
topology: tpu7x:2x2x1
jax: 0.10.0
libtpu: 0.0.40
codegen_flags: <defaults>
</compile_context>

<pallas_src>
import jax
import jax.numpy as jnp
import numpy as np
from jax.experimental import pallas as pl
from jax.experimental.pallas import tpu as pltpu


def knowmix_kernel(htext_ref, hk_ref, wtext_ref, btext_ref, w1kb_ref,
                   w2sel_ref, rep_ref, b2_ref, out_ref):
    """One batch tile per grid step.

    htext_ref : (TB, D)      hk_ref   : (TB, 4K)   lane-dense knowledge slab
    wtext_ref : (D, 4K)      btext_ref: (1, 4K)    fused text-projection terms
    w1kb_ref  : (4K, 4K)     block-diagonal W1k
    w2sel_ref : (4K, 4)      per-source gate-head (w2) selection matrix
    rep_ref   : (4, 4K)      gate-weight replication matrix
    b2_ref    : (1, 1)       scalar gate-head bias (SMEM)
    out_ref   : (TB, 4K)     global_knr slab
    """
    h = htext_ref[...]                       # (TB, D)
    hk = hk_ref[...]                         # (TB, 4K)

    # Gate pre-activations for all 4 knowledge sources in one shot: (TB, 4K)
    a = (jnp.dot(h, wtext_ref[...], preferred_element_type=jnp.float32)
         + jnp.dot(hk, w1kb_ref[...], preferred_element_type=jnp.float32)
         + btext_ref[...])

    # ELU.  expm1(x) written as tanh(x/2)*(exp(x)+1): numerically equivalent to
    # torch's expm1 (no cancellation for small |x|) while using only exp/tanh,
    # which lower on the EUP.  Evaluate on min(a, 0) so the untaken branch
    # never overflows for large positive activations.
    a_neg = jnp.minimum(a, 0.0)
    elu_neg = jnp.tanh(a_neg * 0.5) * (jnp.exp(a_neg) + 1.0)
    a = jnp.where(a > 0, a, elu_neg)

    # Per-source logits via a selection matmul (column i = w2 over the lanes of
    # source i), plus the scalar output bias read from SMEM.     (TB, 4)
    logits = (jnp.dot(a, w2sel_ref[...], preferred_element_type=jnp.float32)
              + b2_ref[0, 0])

    # Softmax over the 4 knowledge sources.
    m = jnp.max(logits, axis=-1, keepdims=True)
    e = jnp.exp(logits - m)
    w = e / jnp.sum(e, axis=-1, keepdims=True)            # (TB, 4)

    # Expand gate weights to (TB, 4K) (weight i repeated over its K lanes) and
    # scale the knowledge slab -> one full-width unmasked store.
    w_exp = jnp.dot(w, rep_ref[...], preferred_element_type=jnp.float32)
    out_ref[...] = w_exp * hk


def _prepare_gate_params(params, D, K):
    """Parameter-only precompute (batch independent, amortized across calls)."""
    wp, bp = params["wp"], params["bp"]
    w1t, w1k, b1 = params["w1t"], params["w1k"], params["b1"]
    w2 = params["w2"]

    wtext_cols, btext_cols = [], []
    wp_pow = jnp.eye(D, dtype=jnp.float32)
    c = jnp.zeros((1, D), jnp.float32)
    for _ in range(4):
        wp_pow = wp_pow @ wp                  # Wp^i
        c = c @ wp + bp                       # bias accumulated through i projections
        wtext_cols.append(wp_pow @ w1t)       # (D, K): text part of gate i
        btext_cols.append(c @ w1t + b1)       # (1, K)
    wtext = jnp.concatenate(wtext_cols, axis=1)                      # (D, 4K)
    btext = jnp.concatenate(btext_cols, axis=1)                      # (1, 4K)

    eye4 = jnp.eye(4, dtype=jnp.float32)
    w1k_block = jnp.kron(eye4, w1k)                                  # (4K, 4K)
    w2sel = jnp.kron(eye4, w2.reshape(K, 1))                         # (4K, 4)
    rep = jnp.kron(eye4, jnp.ones((1, K), jnp.float32))              # (4, 4K)
    return wtext, btext, w1k_block, w2sel, rep


def _pick_batch_tile(B, D, K4):
    """Largest row tile (multiple of 8, <=512) that fits a VMEM budget next to
    the resident fused weights (input/output tiles are double-buffered)."""
    row_bytes = 4 * (D + 2 * K4)                        # htext + hk in, out slab
    weight_bytes = 4 * (D * K4 + K4 * K4 + K4 * 4 + 4 * K4 + K4)
    avail = max(40 * 1024 * 1024 - 2 * weight_bytes, 2 * 1024 * 1024)
    tb_cap = min(512, max(8, (avail // (4 * row_bytes)) // 8 * 8))
    return B if B <= tb_cap else tb_cap


def knowmix_forward(htext, hk1, hk2, hk3, hk4, params):
    """Wrapper: lane-dense packing, parameter precompute, batched pallas_call."""
    B, D = htext.shape
    K = hk1.shape[-1]
    K4 = 4 * K

    hk_all = jnp.concatenate([hk1, hk2, hk3, hk4], axis=1)           # (B, 4K)
    wtext, btext, w1k_block, w2sel, rep = _prepare_gate_params(params, D, K)
    b2 = params["b2"]                                                # (1, 1)

    tb = _pick_batch_tile(B, D, K4)
    grid = (pl.cdiv(B, tb),)

    flops = 2 * B * (D * K4 + K4 * K4 + K4 * 4 + 4 * K4) + 6 * B * K4
    bytes_accessed = 4 * (B * D + 2 * B * K4 + D * K4 + K4
                          + K4 * K4 + K4 * 4 + 4 * K4 + 1)
    cost = pl.CostEstimate(flops=flops,
                           transcendentals=2 * B * K4 + B * 4,
                           bytes_accessed=bytes_accessed)

    global_knr = pl.pallas_call(
        knowmix_kernel,
        out_shape=jax.ShapeDtypeStruct((B, K4), jnp.float32),
        grid=grid,
        in_specs=[
            pl.BlockSpec((tb, D), lambda i: (i, 0)),              # htext (batch-tiled)
            pl.BlockSpec((tb, K4), lambda i: (i, 0)),             # hk slab (batch-tiled)
            pl.BlockSpec((D, K4), lambda i: (0, 0)),              # fused text weights
            pl.BlockSpec((1, K4), lambda i: (0, 0)),              # fused text bias
            pl.BlockSpec((K4, K4), lambda i: (0, 0)),             # block-diag W1k
            pl.BlockSpec((K4, 4), lambda i: (0, 0)),              # gate-head selection
            pl.BlockSpec((4, K4), lambda i: (0, 0)),              # weight replication
            pl.BlockSpec(memory_space=pltpu.MemorySpace.SMEM),    # b2 scalar
        ],
        out_specs=pl.BlockSpec((tb, K4), lambda i: (i, 0)),
        compiler_params=pltpu.CompilerParams(
            dimension_semantics=("parallel",),
            vmem_limit_bytes=64 * 1024 * 1024),
        cost_estimate=cost,
    )(htext, hk_all, wtext, btext, w1k_block, w2sel, rep, b2)

    knr1 = global_knr[:, 0 * K:1 * K]
    knr2 = global_knr[:, 1 * K:2 * K]
    knr3 = global_knr[:, 2 * K:3 * K]
    knr4 = global_knr[:, 3 * K:4 * K]
    return knr1, knr2, knr3, knr4, global_knr


def _init_params(key, D, K):
    """Deterministic synthetic parameters (shapes from the module __init__)."""
    ks = jax.random.split(key, 8)

    def unif(k, shape, fan_in):
        bound = 1.0 / np.sqrt(fan_in)
        return jax.random.uniform(k, shape, jnp.float32, -bound, bound)

    w1_full = unif(ks[2], (D + K, K), D + K)      # init_weight_func[0]: Linear(D+K, K)
    return {
        "wp":  unif(ks[0], (D, D), D),            # init_text_projection weight (x @ W)
        "bp":  unif(ks[1], (1, D), D),
        "w1t": w1_full[:D, :],                    # split: text part
        "w1k": w1_full[D:, :],                    # split: knowledge part
        "b1":  unif(ks[3], (1, K), D + K),
        "w2":  unif(ks[4], (1, K), K),            # init_weight_func[3]: Linear(K, 1)
        "b2":  unif(ks[5], (1, 1), K),
    }


def _reference(htext, hks, p):
    """Pure-JAX reference mirroring the PyTorch forward exactly (expm1 ELU)."""
    h = htext
    w1 = jnp.concatenate([p["w1t"], p["w1k"]], axis=0)
    logits = []
    for i in range(4):
        h = h @ p["wp"] + p["bp"]
        a = jnp.concatenate([h, hks[i]], axis=-1) @ w1 + p["b1"]
        a = jnp.where(a > 0, a, jnp.expm1(a))     # nn.ELU
        logits.append(a @ p["w2"].T + p["b2"])
    lg = jnp.concatenate(logits, axis=1)
    w = jax.nn.softmax(lg, axis=1)
    knrs = [w[:, i:i + 1] * hks[i] for i in range(4)]
    return knrs + [jnp.concatenate(knrs, axis=1)]


if __name__ == "__main__":
    B, D, K = 8, 32, 32   # batch, hidden_dim, know_dim
    key = jax.random.PRNGKey(0)
    kx, kp = jax.random.split(key)
    kks = jax.random.split(kx, 5)

    htext = jax.random.normal(kks[0], (B, D), jnp.float32)
    hk1 = jax.random.normal(kks[1], (B, K), jnp.float32)
    hk2 = jax.random.normal(kks[2], (B, K), jnp.float32)
    hk3 = jax.random.normal(kks[3], (B, K), jnp.float32)
    hk4 = jax.random.normal(kks[4], (B, K), jnp.float32)

    params = _init_params(kp, D, K)

    fwd = jax.jit(knowmix_forward)
    outs = fwd(htext, hk1, hk2, hk3, hk4, params)
    outs = jax.block_until_ready(outs)

    refs = _reference(htext, [hk1, hk2, hk3, hk4], params)
    # Slight f32 drift expected vs the cumulative formulation (precomputed Wp^i).
    for o, r in zip(outs, refs):
        np.testing.assert_allclose(np.asarray(o), np.asarray(r),
                                   rtol=1e-4, atol=1e-5)

    print("KERNEL_OK")
</pallas_src>

<mosaic_0001>
module attributes {stable_mosaic.version = 11 : i64} {
  func.func @knowmix_kernel(%arg0: i32, %arg1: memref<8x32xf32, #tpu.memory_space<vmem>>, %arg2: memref<8x128xf32, #tpu.memory_space<vmem>>, %arg3: memref<32x128xf32, #tpu.memory_space<vmem>>, %arg4: memref<1x128xf32, #tpu.memory_space<vmem>>, %arg5: memref<128x128xf32, #tpu.memory_space<vmem>>, %arg6: memref<128x4xf32, #tpu.memory_space<vmem>>, %arg7: memref<4x128xf32, #tpu.memory_space<vmem>>, %arg8: memref<1x1xf32, #tpu.memory_space<smem>>, %arg9: memref<8x128xf32, #tpu.memory_space<vmem>>) attributes {dimension_semantics = [#tpu.dimension_semantics<parallel>], iteration_bounds = array<i64: 1>, scalar_prefetch = 0 : i64, scratch_operands = 0 : i64, tpu.core_type = #tpu.core_type<tc>, window_params = [{transform_indices = @transform_0, window_bounds = array<i64: 8, 32>}, {transform_indices = @transform_1, window_bounds = array<i64: 8, 128>}, {pipeline_mode = #tpu.pipeline_mode<synchronous>, transform_indices = @transform_2, window_bounds = array<i64: 32, 128>}, {pipeline_mode = #tpu.pipeline_mode<synchronous>, transform_indices = @transform_3, window_bounds = array<i64: 1, 128>}, {pipeline_mode = #tpu.pipeline_mode<synchronous>, transform_indices = @transform_4, window_bounds = array<i64: 128, 128>}, {pipeline_mode = #tpu.pipeline_mode<synchronous>, transform_indices = @transform_5, window_bounds = array<i64: 128, 4>}, {pipeline_mode = #tpu.pipeline_mode<synchronous>, transform_indices = @transform_6, window_bounds = array<i64: 4, 128>}, {transform_indices = @transform_7, window_bounds = array<i64: 1, 1>}, {transform_indices = @transform_8, window_bounds = array<i64: 8, 128>}]} {
    %c0 = arith.constant 0 : index
    %c0_0 = arith.constant 0 : index
    %0 = vector.load %arg1[%c0, %c0_0] : memref<8x32xf32, #tpu.memory_space<vmem>>, vector<8x32xf32>
    %c0_1 = arith.constant 0 : index
    %c0_2 = arith.constant 0 : index
    %1 = vector.load %arg2[%c0_1, %c0_2] : memref<8x128xf32, #tpu.memory_space<vmem>>, vector<8x128xf32>
    %c0_3 = arith.constant 0 : index
    %c0_4 = arith.constant 0 : index
    %2 = vector.load %arg3[%c0_3, %c0_4] : memref<32x128xf32, #tpu.memory_space<vmem>>, vector<32x128xf32>
    %cst = arith.constant dense<0.000000e+00> : vector<8x128xf32>
    %3 = tpu.matmul %0, %2, %cst {dimension_numbers = #tpu.dot_dimension_numbers<[1], [0], [0], [1], [0, 0, 1, 1], [], []>} : vector<8x32xf32>, vector<32x128xf32>, vector<8x128xf32> -> vector<8x128xf32>
    %c0_5 = arith.constant 0 : index
    %c0_6 = arith.constant 0 : index
    %4 = vector.load %arg5[%c0_5, %c0_6] : memref<128x128xf32, #tpu.memory_space<vmem>>, vector<128x128xf32>
    %cst_7 = arith.constant dense<0.000000e+00> : vector<8x128xf32>
    %5 = tpu.matmul %1, %4, %cst_7 {dimension_numbers = #tpu.dot_dimension_numbers<[1], [0], [0], [1], [0, 0, 1, 1], [], []>} : vector<8x128xf32>, vector<128x128xf32>, vector<8x128xf32> -> vector<8x128xf32>
    %6 = arith.addf %3, %5 : vector<8x128xf32>
    %c0_8 = arith.constant 0 : index
    %c0_9 = arith.constant 0 : index
    %7 = vector.load %arg4[%c0_8, %c0_9] : memref<1x128xf32, #tpu.memory_space<vmem>>, vector<1x128xf32>
    %8 = vector.broadcast %7 : vector<1x128xf32> to vector<8x128xf32>
    %9 = arith.addf %6, %8 : vector<8x128xf32>
    %cst_10 = arith.constant 0.000000e+00 : f32
    %10 = vector.broadcast %cst_10 : f32 to vector<8x128xf32>
    %11 = arith.minimumf %9, %10 : vector<8x128xf32>
    %cst_11 = arith.constant 5.000000e-01 : f32
    %12 = vector.broadcast %cst_11 : f32 to vector<8x128xf32>
    %13 = arith.mulf %11, %12 : vector<8x128xf32>
    %14 = math.tanh %13 : vector<8x128xf32>
    %15 = math.exp %11 : vector<8x128xf32>
    %cst_12 = arith.constant 1.000000e+00 : f32
    %16 = vector.broadcast %cst_12 : f32 to vector<8x128xf32>
    %17 = arith.addf %15, %16 : vector<8x128xf32>
    %18 = arith.mulf %14, %17 : vector<8x128xf32>
    %cst_13 = arith.constant 0.000000e+00 : f32
    %19 = vector.broadcast %cst_13 : f32 to vector<8x128xf32>
    %20 = arith.cmpf ogt, %9, %19 : vector<8x128xf32>
    %21 = arith.select %20, %9, %18 : vector<8x128xi1>, vector<8x128xf32>
    %c0_14 = arith.constant 0 : index
    %c0_15 = arith.constant 0 : index
    %22 = vector.load %arg6[%c0_14, %c0_15] : memref<128x4xf32, #tpu.memory_space<vmem>>, vector<128x4xf32>
    %cst_16 = arith.constant dense<0.000000e+00> : vector<8x4xf32>
    %23 = tpu.matmul %21, %22, %cst_16 {dimension_numbers = #tpu.dot_dimension_numbers<[1], [0], [0], [1], [0, 0, 1, 1], [], []>} : vector<8x128xf32>, vector<128x4xf32>, vector<8x4xf32> -> vector<8x4xf32>
    %c0_17 = arith.constant 0 : index
    %c0_18 = arith.constant 0 : index
    %24 = memref.load %arg8[%c0_17, %c0_18] : memref<1x1xf32, #tpu.memory_space<smem>>
    %25 = vector.broadcast %24 : f32 to vector<8x4xf32>
    %26 = arith.addf %23, %25 : vector<8x4xf32>
    %cst_19 = arith.constant dense<0xFF800000> : vector<8xf32>
    %27 = vector.multi_reduction <maximumf>, %26, %cst_19 [1] : vector<8x4xf32> to vector<8xf32>
    %28 = vector.shape_cast %27 : vector<8xf32> to vector<8x1xf32>
    %29 = vector.broadcast %28 : vector<8x1xf32> to vector<8x4xf32>
    %30 = arith.subf %26, %29 : vector<8x4xf32>
    %31 = math.exp %30 : vector<8x4xf32>
    %cst_20 = arith.constant dense<0.000000e+00> : vector<8xf32>
    %32 = vector.multi_reduction <add>, %31, %cst_20 [1] : vector<8x4xf32> to vector<8xf32>
    %33 = vector.shape_cast %32 : vector<8xf32> to vector<8x1xf32>
    %34 = vector.broadcast %33 : vector<8x1xf32> to vector<8x4xf32>
    %35 = arith.divf %31, %34 : vector<8x4xf32>
    %c0_21 = arith.constant 0 : index
    %c0_22 = arith.constant 0 : index
    %36 = vector.load %arg7[%c0_21, %c0_22] : memref<4x128xf32, #tpu.memory_space<vmem>>, vector<4x128xf32>
    %cst_23 = arith.constant dense<0.000000e+00> : vector<8x128xf32>
    %37 = tpu.matmul %35, %36, %cst_23 {dimension_numbers = #tpu.dot_dimension_numbers<[1], [0], [0], [1], [0, 0, 1, 1], [], []>} : vector<8x4xf32>, vector<4x128xf32>, vector<8x128xf32> -> vector<8x128xf32>
    %38 = arith.mulf %37, %1 : vector<8x128xf32>
    %c0_24 = arith.constant 0 : index
    %c0_25 = arith.constant 0 : index
    %39 = vector.load %arg9[%c0_24, %c0_25] : memref<8x128xf32, #tpu.memory_space<vmem>>, vector<8x128xf32>
    tpu.vector_store %arg9[%c0_24, %c0_25], %38 {strides = array<i32>} : memref<8x128xf32, #tpu.memory_space<vmem>>, vector<8x128xf32>,
    return
  }
  func.func @transform_0(%arg0: i32) -> (i32, i32) {
    %c0_i32 = arith.constant 0 : i32
    %c0_i32_0 = arith.constant 0 : i32
    return %arg0, %c0_i32 : i32, i32
  }
  func.func @transform_1(%arg0: i32) -> (i32, i32) {
    %c0_i32 = arith.constant 0 : i32
    %c0_i32_0 = arith.constant 0 : i32
    return %arg0, %c0_i32 : i32, i32
  }
  func.func @transform_2(%arg0: i32) -> (i32, i32) {
    %c0_i32 = arith.constant 0 : i32
    %c0_i32_0 = arith.constant 0 : i32
    %c0_i32_1 = arith.constant 0 : i32
    return %c0_i32, %c0_i32_0 : i32, i32
  }
  func.func @transform_3(%arg0: i32) -> (i32, i32) {
    %c0_i32 = arith.constant 0 : i32
    %c0_i32_0 = arith.constant 0 : i32
    %c0_i32_1 = arith.constant 0 : i32
    return %c0_i32, %c0_i32_0 : i32, i32
  }
  func.func @transform_4(%arg0: i32) -> (i32, i32) {
    %c0_i32 = arith.constant 0 : i32
    %c0_i32_0 = arith.constant 0 : i32
    %c0_i32_1 = arith.constant 0 : i32
    return %c0_i32, %c0_i32_0 : i32, i32
  }
  func.func @transform_5(%arg0: i32) -> (i32, i32) {
    %c0_i32 = arith.constant 0 : i32
    %c0_i32_0 = arith.constant 0 : i32
    %c0_i32_1 = arith.constant 0 : i32
    return %c0_i32, %c0_i32_0 : i32, i32
  }
  func.func @transform_6(%arg0: i32) -> (i32, i32) {
    %c0_i32 = arith.constant 0 : i32
    %c0_i32_0 = arith.constant 0 : i32
    %c0_i32_1 = arith.constant 0 : i32
    return %c0_i32, %c0_i32_0 : i32, i32
  }
  func.func @transform_7(%arg0: i32) -> (i32, i32) {
    %c0_i32 = arith.constant 0 : i32
    %c0_i32_0 = arith.constant 0 : i32
    %c0_i32_1 = arith.constant 0 : i32
    return %c0_i32, %c0_i32_0 : i32, i32
  }
  func.func @transform_8(%arg0: i32) -> (i32, i32) {
    %c0_i32 = arith.constant 0 : i32
    %c0_i32_0 = arith.constant 0 : i32
    return %arg0, %c0_i32 : i32, i32
  }
}

</mosaic_0001>

<llo_original>
// kernel: knowmix_forward.1
$region0: #{knowmix_forward.1}
  #allocation0 [shape = 'u32[]', space=smem, size = 0x4, offset = 0x4, fixed_abs, tag = 'smem constant byte address 0x4 - core index']
  #allocation1 [shape = 'u32[144,128]{1,0:T(1,128)}', space=vmem, size = 0x12000, scoped, tag = 'internal scratch']
  #allocation2 [shape = 'f32[1,1]{1,0:T(1,128)S(6)}', space=smem, size = 0x200, scoped, tag = 'scoped memory for knowmix_forward.1']
  %s0 = inlined_call_operand.hbm [shape: f32[8,32], index: 0, kind: input, shape index: {}]
  %s1 = inlined_call_operand.hbm [shape: f32[8,128], index: 1, kind: input, shape index: {}]
  %s2 = inlined_call_operand.hbm [shape: f32[32,128], index: 2, kind: input, shape index: {}]
  %s3 = inlined_call_operand.hbm [shape: f32[1,128], index: 3, kind: input, shape index: {}]
  %s4 = inlined_call_operand.hbm [shape: f32[128,128], index: 4, kind: input, shape index: {}]
  %s5 = inlined_call_operand.hbm [shape: f32[128,4], index: 5, kind: input, shape index: {}]
  %s6 = inlined_call_operand.hbm [shape: f32[4,128], index: 6, kind: input, shape index: {}]
  %s7 = inlined_call_operand.<no memory space> [shape: f32[1,1], index: 7, kind: input, shape index: {}]
  %s8 = inlined_call_operand.hbm [shape: f32[8,128], index: 8, kind: output, shape index: {}]
  %s9 = sld [smem:[#allocation0]]
  $region70: #{knowmix_forward.1} parent=0
    _
  %s11 = ssub.s32 1, %s9
  %s12 = scalar_select 0, %s11, %s9
  %13 = sst [smem:[#allocation2]] %s7
  $region1: #{knowmix_forward.1} parent=0
    #allocation3 [shape = 'u8[4096]{0}', space=vmem, size = 0x1000, scoped, tag = 'input window, operand 0, single buffered']
    #allocation4 [shape = 's32[1]{0}', space=sflag, size = 0x4, scoped, tag = 'scoped memory for knowmix_forward.1']
    #allocation5 [shape = 's32[1]{0}', space=sflag, size = 0x4, scoped, tag = 'scoped memory for knowmix_forward.1']
    #allocation6 [shape = 'u8[4096]{0}', space=vmem, size = 0x1000, scoped, tag = 'input window, operand 1, single buffered']
    #allocation7 [shape = 's32[1]{0}', space=sflag, size = 0x4, scoped, tag = 'scoped memory for knowmix_forward.1']
    #allocation8 [shape = 'u8[16384]{0}', space=vmem, size = 0x4000, scoped, tag = 'input window, operand 2, single buffered']
    #allocation9 [shape = 'u8[512]{0}', space=vmem, size = 0x400, scoped, tag = 'input window, operand 3, single buffered']
    #allocation10 [shape = 's32[1]{0}', space=sflag, size = 0x4, scoped, tag = 'scoped memory for knowmix_forward.1']
    #allocation11 [shape = 'u8[65536]{0}', space=vmem, size = 0x10000, scoped, tag = 'input window, operand 4, single buffered']
    #allocation12 [shape = 'u8[65536]{0}', space=vmem, size = 0x10000, scoped, tag = 'input window, operand 5, single buffered']
    #allocation13 [shape = 's32[1]{0}', space=sflag, size = 0x4, scoped, tag = 'scoped memory for knowmix_forward.1']
    #allocation14 [shape = 'u8[2048]{0}', space=vmem, size = 0x800, scoped, tag = 'input window, operand 6, single buffered']
    #allocation15 [shape = 'u8[4096]{0}', space=vmem, size = 0x1000, scoped, tag = 'output window, operand 0, single buffered']
    %14 = vsyncpa [#allocation4], 0
    %15 = vsyncpa [#allocation7], 0
    %16 = vsyncpa [#allocation10], 0
    %17 = vsyncpa [#allocation13], 0
    %18 = vsyncpa [#allocation5], 0
    // Predicated region
    $region2: #{knowmix_forward.1} parent=1 // pred_check
      _
    $region3: #{knowmix_forward.1} parent=1 // pred_check_branch
      %20 = sbr.rel (0) target = $region5
    $region4: #{knowmix_forward.1} parent=1 // pred_region
      %s22 = ssub.s32 128, 128
      %23 = vsyncadd [#allocation4], %s22
      %s25 = sshll.u32 [#allocation3], 4
      %s26 = int_to_ptr.vmem [resolvable:$true] %s25
      %28 = dma.hbm_to_vmem [thread:$0]  %s0, 128, %s26, [#allocation4]
    $region5: #{knowmix_forward.1} parent=1 // pred_fallthru
      _
    // Predicated region
    $region6: #{knowmix_forward.1} parent=1 // pred_check
      _
    $region7: #{knowmix_forward.1} parent=1 // pred_check_branch
      %30 = sbr.rel (0) target = $region9
    $region8: #{knowmix_forward.1} parent=1 // pred_region
      %s32 = ssub.s32 128, 128
      %33 = vsyncadd [#allocation7], %s32
      %s35 = sshll.u32 [#allocation6], 4
      %s36 = int_to_ptr.vmem [resolvable:$true] %s35
      %38 = dma.hbm_to_vmem [thread:$0]  %s1, 128, %s36, [#allocation7]
    $region9: #{knowmix_forward.1} parent=1 // pred_fallthru
      _
    // Predicated region
    $region10: #{knowmix_forward.1} parent=1 // pred_check
      _
    $region11: #{knowmix_forward.1} parent=1 // pred_check_branch
      %40 = sbr.rel (0) target = $region13
    $region12: #{knowmix_forward.1} parent=1 // pred_region
      %s42 = ssub.s32 512, 512
      %43 = vsyncadd [#allocation7], %s42
      %s44 = sshll.u32 [#allocation8], 4
      %s45 = int_to_ptr.vmem [resolvable:$true] %s44
      %50 = dma.hbm_to_vmem [thread:$0]  %s2, 512, %s45, [#allocation7], 128, 128, 8
    $region13: #{knowmix_forward.1} parent=1 // pred_fallthru
      _
    // Predicated region
    $region14: #{knowmix_forward.1} parent=1 // pred_check
      _
    $region15: #{knowmix_forward.1} parent=1 // pred_check_branch
      %52 = sbr.rel (0) target = $region17
    $region16: #{knowmix_forward.1} parent=1 // pred_region
      %s54 = ssub.s32 16, 16
      %55 = vsyncadd [#allocation10], %s54
      %s57 = sshll.u32 [#allocation9], 4
      %s58 = int_to_ptr.vmem [resolvable:$true] %s57
      %60 = dma.hbm_to_vmem [thread:$0]  %s3, 16, %s58, [#allocation10]
    $region17: #{knowmix_forward.1} parent=1 // pred_fallthru
      _
    // Predicated region
    $region18: #{knowmix_forward.1} parent=1 // pred_check
      _
    $region19: #{knowmix_forward.1} parent=1 // pred_check_branch
      %62 = sbr.rel (0) target = $region21
    $region20: #{knowmix_forward.1} parent=1 // pred_region
      %s64 = ssub.s32 2048, 2048
      %65 = vsyncadd [#allocation10], %s64
      %s66 = sshll.u32 [#allocation11], 4
      %s67 = int_to_ptr.vmem [resolvable:$true] %s66
      %72 = dma.hbm_to_vmem [thread:$0]  %s4, 2048, %s67, [#allocation10], 128, 128, 8
    $region21: #{knowmix_forward.1} parent=1 // pred_fallthru
      _
    // Predicated region
    $region22: #{knowmix_forward.1} parent=1 // pred_check
      _
    $region23: #{knowmix_forward.1} parent=1 // pred_check_branch
      %74 = sbr.rel (0) target = $region25
    $region24: #{knowmix_forward.1} parent=1 // pred_region
      %s76 = ssub.s32 2048, 2048
      %77 = vsyncadd [#allocation13], %s76
      %s78 = sshll.u32 [#allocation12], 4
      %s79 = int_to_ptr.vmem [resolvable:$true] %s78
      %84 = dma.hbm_to_vmem [thread:$0]  %s5, 2048, %s79, [#allocation13], 128, 128, 8
    $region25: #{knowmix_forward.1} parent=1 // pred_fallthru
      _
    // Predicated region
    $region26: #{knowmix_forward.1} parent=1 // pred_check
      _
    $region27: #{knowmix_forward.1} parent=1 // pred_check_branch
      %86 = sbr.rel (0) target = $region29
    $region28: #{knowmix_forward.1} parent=1 // pred_region
      %s88 = ssub.s32 64, 64
      %89 = vsyncadd [#allocation13], %s88
      %s91 = sshll.u32 [#allocation14], 4
      %s92 = int_to_ptr.vmem [resolvable:$true] %s91
      %94 = dma.hbm_to_vmem [thread:$0]  %s6, 64, %s92, [#allocation13]
    $region29: #{knowmix_forward.1} parent=1 // pred_fallthru
      _
    // Predicated region
    $region30: #{knowmix_forward.1} parent=1 // pred_check
      _
    $region31: #{knowmix_forward.1} parent=1 // pred_check_branch
      %96 = sbr.rel (0) target = $region33
    $region32: #{knowmix_forward.1} parent=1 // pred_region
      _
    $region33: #{knowmix_forward.1} parent=1 // pred_fallthru
      _
    // Predicated region
    $region34: #{knowmix_forward.1} parent=1 // pred_check
      _
    $region35: #{knowmix_forward.1} parent=1 // pred_check_branch
      %98 = sbr.rel (0) target = $region37
    $region36: #{knowmix_forward.1} parent=1 // pred_region
      %99 = dma.done [#allocation4], 128
    $region37: #{knowmix_forward.1} parent=1 // pred_fallthru
      _
    // Predicated region
    $region38: #{knowmix_forward.1} parent=1 // pred_check
      _
    $region39: #{knowmix_forward.1} parent=1 // pred_check_branch
      %101 = sbr.rel (0) target = $region41
    $region40: #{knowmix_forward.1} parent=1 // pred_region
      %102 = dma.done [#allocation7], 128
    $region41: #{knowmix_forward.1} parent=1 // pred_fallthru
      _
    // Predicated region
    $region42: #{knowmix_forward.1} parent=1 // pred_check
      _
    $region43: #{knowmix_forward.1} parent=1 // pred_check_branch
      %104 = sbr.rel (0) target = $region45
    $region44: #{knowmix_forward.1} parent=1 // pred_region
      %105 = dma.done [#allocation7], 512
    $region45: #{knowmix_forward.1} parent=1 // pred_fallthru
      _
    // Predicated region
    $region46: #{knowmix_forward.1} parent=1 // pred_check
      _
    $region47: #{knowmix_forward.1} parent=1 // pred_check_branch
      %107 = sbr.rel (0) target = $region49
    $region48: #{knowmix_forward.1} parent=1 // pred_region
      %108 = dma.done [#allocation10], 16
    $region49: #{knowmix_forward.1} parent=1 // pred_fallthru
      _
    // Predicated region
    $region50: #{knowmix_forward.1} parent=1 // pred_check
      _
    $region51: #{knowmix_forward.1} parent=1 // pred_check_branch
      %110 = sbr.rel (0) target = $region53
    $region52: #{knowmix_forward.1} parent=1 // pred_region
      %111 = dma.done [#allocation10], 2048
    $region53: #{knowmix_forward.1} parent=1 // pred_fallthru
      _
    // Predicated region
    $region54: #{knowmix_forward.1} parent=1 // pred_check
      _
    $region55: #{knowmix_forward.1} parent=1 // pred_check_branch
      %113 = sbr.rel (0) target = $region57
    $region56: #{knowmix_forward.1} parent=1 // pred_region
      %114 = dma.done [#allocation13], 2048
    $region57: #{knowmix_forward.1} parent=1 // pred_fallthru
      _
    // Predicated region
    $region58: #{knowmix_forward.1} parent=1 // pred_check
      _
    $region59: #{knowmix_forward.1} parent=1 // pred_check_branch
      %116 = sbr.rel (0) target = $region61
    $region60: #{knowmix_forward.1} parent=1 // pred_region
      %117 = dma.done [#allocation13], 64
    $region61: #{knowmix_forward.1} parent=1 // pred_fallthru
      _
    %v118 = vld [vmem:[#allocation3] sm:$0xff]
    %v119 = vld [vmem:[#allocation6] sm:$0xff]
    %v120 = vld [vmem:[#allocation8] sm:$0xff]
    %v121 = vld [vmem:[#allocation8 + $0x8] sm:$0xff]
    %v122 = vld [vmem:[#allocation8 + $0x10] sm:$0xff]
    %v123 = vld [vmem:[#allocation8 + $0x18] sm:$0xff]
    %v124 = vld [vmem:[#allocation11] sm:$0xff]
    %v125 = vld [vmem:[#allocation11 + $0x8] sm:$0xff]
    %v126 = vld [vmem:[#allocation11 + $0x10] sm:$0xff]
    %v127 = vld [vmem:[#allocation11 + $0x18] sm:$0xff]
    %v128 = vld [vmem:[#allocation11 + $0x20] sm:$0xff]
    %v129 = vld [vmem:[#allocation11 + $0x28] sm:$0xff]
    %v130 = vld [vmem:[#allocation11 + $0x30] sm:$0xff]
    %v131 = vld [vmem:[#allocation11 + $0x38] sm:$0xff]
    %v132 = vld [vmem:[#allocation11 + $0x40] sm:$0xff]
    %v133 = vld [vmem:[#allocation11 + $0x48] sm:$0xff]
    %v134 = vld [vmem:[#allocation11 + $0x50] sm:$0xff]
    %v135 = vld [vmem:[#allocation11 + $0x58] sm:$0xff]
    %v136 = vld [vmem:[#allocation11 + $0x60] sm:$0xff]
    %v137 = vld [vmem:[#allocation11 + $0x68] sm:$0xff]
    %v138 = vld [vmem:[#allocation11 + $0x70] sm:$0xff]
    %v139 = vld [vmem:[#allocation11 + $0x78] sm:$0xff]
    %140 = vmatprep.subr.mxu0 0.0
    %141 = vmatpush1.msra.mxu0 %v124
    %142 = vmatprep.subr.mxu0 0.0
    %143 = vmatpush1.msra.mxu0 %v125
    %144 = vmatprep.subr.mxu0 0.0
    %145 = vmatpush1.msra.mxu0 %v126
    %146 = vmatprep.subr.mxu0 0.0
    %147 = vmatpush1.msra.mxu0 %v127
    %148 = vmatprep.subr.mxu0 0.0
    %149 = vmatpush1.msra.mxu0 %v128
    %150 = vmatprep.subr.mxu0 0.0
    %151 = vmatpush1.msra.mxu0 %v129
    %152 = vmatprep.subr.mxu0 0.0
    %153 = vmatpush1.msra.mxu0 %v130
    %154 = vmatprep.subr.mxu0 0.0
    %155 = vmatpush1.msra.mxu0 %v131
    %156 = vmatprep.subr.mxu0 0.0
    %157 = vmatpush1.msra.mxu0 %v132
    %158 = vmatprep.subr.mxu0 0.0
    %159 = vmatpush1.msra.mxu0 %v133
    %160 = vmatprep.subr.mxu0 0.0
    %161 = vmatpush1.msra.mxu0 %v134
    %162 = vmatprep.subr.mxu0 0.0
    %163 = vmatpush1.msra.mxu0 %v135
    %164 = vmatprep.subr.mxu0 0.0
    %165 = vmatpush1.msra.mxu0 %v136
    %166 = vmatprep.subr.mxu0 0.0
    %167 = vmatpush1.msra.mxu0 %v137
    %168 = vmatprep.subr.mxu0 0.0
    %169 = vmatpush1.msra.mxu0 %v138
    %170 = vmatprep.subr.mxu0 0.0
    %171 = vmatpush1.msra.mxu0 %v139
    %172 = vmatprep.subr.mxu0 0.0
    %173 = vmatpush1.msra.mxu0 0.0
    %174 = vmatprep.subr.mxu0 0.0
    %175 = vmatpush1.msra.mxu0 0.0
    %176 = vmatprep.subr.mxu0 0.0
    %177 = vmatpush1.msra.mxu0 0.0
    %178 = vmatprep.subr.mxu0 0.0
    %179 = vmatpush1.msra.mxu0 0.0
    %180 = vmatprep.subr.mxu0 0.0
    %181 = vmatpush1.msra.mxu0 0.0
    %182 = vmatprep.subr.mxu0 0.0
    %183 = vmatpush1.msra.mxu0 0.0
    %184 = vmatprep.subr.mxu0 0.0
    %185 = vmatpush1.msra.mxu0 0.0
    %186 = vmatprep.subr.mxu0 0.0
    %187 = vmatpush1.msra.mxu0 0.0
    %188 = vmatprep.subr.mxu0 0.0
    %189 = vmatpush1.msra.mxu0 0.0
    %190 = vmatprep.subr.mxu0 0.0
    %191 = vmatpush1.msra.mxu0 0.0
    %192 = vmatprep.subr.mxu0 0.0
    %193 = vmatpush1.msra.mxu0 0.0
    %194 = vmatprep.subr.mxu0 0.0
    %195 = vmatpush1.msra.mxu0 0.0
    %196 = vmatprep.subr.mxu0 0.0
    %197 = vmatpush1.msra.mxu0 0.0
    %198 = vmatprep.subr.mxu0 0.0
    %199 = vmatpush1.msra.mxu0 0.0
    %200 = vmatprep.subr.mxu0 0.0
    %201 = vmatpush1.msra.mxu0 0.0
    %202 = vmatprep.subr.mxu0 0.0
    %203 = vmatpush1.msra.mxu0 0.0
    %204 = vmatprep.mubr.f32.mxu0 0.0
    %205 = vmatmul.mubr.f32.gmra.mrb[0].mxu0 %v119
    %v206 = vpop.f32.mrb[0].mxu0
    %v207 = vadd.f32 0.0, %v206
    %v208 = vpop.f32.mrb[0].mxu0
    %209 = vdwg.mxu0
    %vm210 = vcmask 261120
    %v212 = vsel %vm210, %v118, 0
    %214 = vmatprep.subr.mxu0 0.0
    %215 = vmatpush1.msra.mxu0 %v120
    %216 = vmatprep.subr.mxu0 0.0
    %217 = vmatpush1.msra.mxu0 %v121
    %218 = vmatprep.subr.mxu0 0.0
    %219 = vmatpush1.msra.mxu0 %v122
    %220 = vmatprep.subr.mxu0 0.0
    %221 = vmatpush1.msra.mxu0 %v123
    %222 = vmatprep.subr.mxu0 0.0
    %223 = vmatpush1.msra.mxu0 0.0
    %224 = vmatprep.subr.mxu0 0.0
    %225 = vmatpush1.msra.mxu0 0.0
    %226 = vmatprep.subr.mxu0 0.0
    %227 = vmatpush1.msra.mxu0 0.0
    %228 = vmatprep.subr.mxu0 0.0
    %229 = vmatpush1.msra.mxu0 0.0
    %230 = vmatprep.subr.mxu0 0.0
    %231 = vmatpush1.msra.mxu0 0.0
    %232 = vmatprep.subr.mxu0 0.0
    %233 = vmatpush1.msra.mxu0 0.0
    %234 = vmatprep.subr.mxu0 0.0
    %235 = vmatpush1.msra.mxu0 0.0
    %236 = vmatprep.subr.mxu0 0.0
    %237 = vmatpush1.msra.mxu0 0.0
    %238 = vmatprep.subr.mxu0 0.0
    %239 = vmatpush1.msra.mxu0 0.0
    %240 = vmatprep.subr.mxu0 0.0
    %241 = vmatpush1.msra.mxu0 0.0
    %242 = vmatprep.subr.mxu0 0.0
    %243 = vmatpush1.msra.mxu0 0.0
    %244 = vmatprep.subr.mxu0 0.0
    %245 = vmatpush1.msra.mxu0 0.0
    %246 = vmatprep.subr.mxu0 0.0
    %247 = vmatpush1.msra.mxu0 0.0
    %248 = vmatprep.subr.mxu0 0.0
    %249 = vmatpush1.msra.mxu0 0.0
    %250 = vmatprep.subr.mxu0 0.0
    %251 = vmatpush1.msra.mxu0 0.0
    %252 = vmatprep.subr.mxu0 0.0
    %253 = vmatpush1.msra.mxu0 0.0
    %254 = vmatprep.subr.mxu0 0.0
    %255 = vmatpush1.msra.mxu0 0.0
    %256 = vmatprep.subr.mxu0 0.0
    %257 = vmatpush1.msra.mxu0 0.0
    %258 = vmatprep.subr.mxu0 0.0
    %259 = vmatpush1.msra.mxu0 0.0
    %260 = vmatprep.subr.mxu0 0.0
    %261 = vmatpush1.msra.mxu0 0.0
    %262 = vmatprep.subr.mxu0 0.0
    %263 = vmatpush1.msra.mxu0 0.0
    %264 = vmatprep.subr.mxu0 0.0
    %265 = vmatpush1.msra.mxu0 0.0
    %266 = vmatprep.subr.mxu0 0.0
    %267 = vmatpush1.msra.mxu0 0.0
    %268 = vmatprep.subr.mxu0 0.0
    %269 = vmatpush1.msra.mxu0 0.0
    %270 = vmatprep.subr.mxu0 0.0
    %271 = vmatpush1.msra.mxu0 0.0
    %272 = vmatprep.subr.mxu0 0.0
    %273 = vmatpush1.msra.mxu0 0.0
    %274 = vmatprep.subr.mxu0 0.0
    %275 = vmatpush1.msra.mxu0 0.0
    %276 = vmatprep.subr.mxu0 0.0
    %277 = vmatpush1.msra.mxu0 0.0
    %278 = vmatprep.mubr.f32.mxu0 0.0
    %279 = vmatmul.mubr.f32.gmra.mrb[0].mxu0 %v212
    %v280 = vpop.f32.mrb[0].mxu0
    %v281 = vadd.f32 %v207, %v280
    %v282 = vpop.f32.mrb[0].mxu0
    %283 = vdwg.mxu0
    %v284 = vld [vmem:[#allocation9] sm:$0x1]
    %v286 = vlaneseq
    %v287 = vshrl.u32 %v286, 7
    %v288 = vsub.s32 0, %v287
    %v289 = vrot.slane %v284, %v288
    %v291 = vadd.f32 %v281, %v289
    %v292 = vmin.f32 %v291, 0.0
    %v293 = vmul.f32 %v292, 0.5
    %v294 = vtanh.pop %v293
    %v295 = vmul.f32 %v292, 1.442695
    %v296 = vpow.pop %v295
    %v297 = vadd.f32 %v296, 1.0
    %v298 = vmul.f32 %v294, %v297
    %vm299 = vcmp.gt.f32.partialorder %v291, 0.0
    %v300 = vsel %vm299, %v291, %v298
    %v301 = vld [vmem:[#allocation12] sm:$0xff]
    %v302 = vld [vmem:[#allocation12 + $0x8] sm:$0xff]
    %v303 = vld [vmem:[#allocation12 + $0x10] sm:$0xff]
    %v304 = vld [vmem:[#allocation12 + $0x18] sm:$0xff]
    %v305 = vld [vmem:[#allocation12 + $0x20] sm:$0xff]
    %v306 = vld [vmem:[#allocation12 + $0x28] sm:$0xff]
    %v307 = vld [vmem:[#allocation12 + $0x30] sm:$0xff]
    %v308 = vld [vmem:[#allocation12 + $0x38] sm:$0xff]
    %v309 = vld [vmem:[#allocation12 + $0x40] sm:$0xff]
    %v310 = vld [vmem:[#allocation12 + $0x48] sm:$0xff]
    %v311 = vld [vmem:[#allocation12 + $0x50] sm:$0xff]
    %v312 = vld [vmem:[#allocation12 + $0x58] sm:$0xff]
    %v313 = vld [vmem:[#allocation12 + $0x60] sm:$0xff]
    %v314 = vld [vmem:[#allocation12 + $0x68] sm:$0xff]
    %v315 = vld [vmem:[#allocation12 + $0x70] sm:$0xff]
    %v316 = vld [vmem:[#allocation12 + $0x78] sm:$0xff]
    %s317 = sld [smem:[#allocation2]]
    %v318 = vstv %s317
    %319 = vmatprep.subr.mxu0 0.0
    %320 = vmatpush1.msra.mxu0 %v301
    %321 = vmatprep.subr.mxu0 0.0
    %322 = vmatpush1.msra.mxu0 %v302
    %323 = vmatprep.subr.mxu0 0.0
    %324 = vmatpush1.msra.mxu0 %v303
    %325 = vmatprep.subr.mxu0 0.0
    %326 = vmatpush1.msra.mxu0 %v304
    %327 = vmatprep.subr.mxu0 0.0
    %328 = vmatpush1.msra.mxu0 %v305
    %329 = vmatprep.subr.mxu0 0.0
    %330 = vmatpush1.msra.mxu0 %v306
    %331 = vmatprep.subr.mxu0 0.0
    %332 = vmatpush1.msra.mxu0 %v307
    %333 = vmatprep.subr.mxu0 0.0
    %334 = vmatpush1.msra.mxu0 %v308
    %335 = vmatprep.subr.mxu0 0.0
    %336 = vmatpush1.msra.mxu0 %v309
    %337 = vmatprep.subr.mxu0 0.0
    %338 = vmatpush1.msra.mxu0 %v310
    %339 = vmatprep.subr.mxu0 0.0
    %340 = vmatpush1.msra.mxu0 %v311
    %341 = vmatprep.subr.mxu0 0.0
    %342 = vmatpush1.msra.mxu0 %v312
    %343 = vmatprep.subr.mxu0 0.0
    %344 = vmatpush1.msra.mxu0 %v313
    %345 = vmatprep.subr.mxu0 0.0
    %346 = vmatpush1.msra.mxu0 %v314
    %347 = vmatprep.subr.mxu0 0.0
    %348 = vmatpush1.msra.mxu0 %v315
    %349 = vmatprep.subr.mxu0 0.0
    %350 = vmatpush1.msra.mxu0 %v316
    %351 = vmatprep.subr.mxu0 0.0
    %352 = vmatpush1.msra.mxu0 0.0
    %353 = vmatprep.subr.mxu0 0.0
    %354 = vmatpush1.msra.mxu0 0.0
    %355 = vmatprep.subr.mxu0 0.0
    %356 = vmatpush1.msra.mxu0 0.0
    %357 = vmatprep.subr.mxu0 0.0
    %358 = vmatpush1.msra.mxu0 0.0
    %359 = vmatprep.subr.mxu0 0.0
    %360 = vmatpush1.msra.mxu0 0.0
    %361 = vmatprep.subr.mxu0 0.0
    %362 = vmatpush1.msra.mxu0 0.0
    %363 = vmatprep.subr.mxu0 0.0
    %364 = vmatpush1.msra.mxu0 0.0
    %365 = vmatprep.subr.mxu0 0.0
    %366 = vmatpush1.msra.mxu0 0.0
    %367 = vmatprep.subr.mxu0 0.0
    %368 = vmatpush1.msra.mxu0 0.0
    %369 = vmatprep.subr.mxu0 0.0
    %370 = vmatpush1.msra.mxu0 0.0
    %371 = vmatprep.subr.mxu0 0.0
    %372 = vmatpush1.msra.mxu0 0.0
    %373 = vmatprep.subr.mxu0 0.0
    %374 = vmatpush1.msra.mxu0 0.0
    %375 = vmatprep.subr.mxu0 0.0
    %376 = vmatpush1.msra.mxu0 0.0
    %377 = vmatprep.subr.mxu0 0.0
    %378 = vmatpush1.msra.mxu0 0.0
    %379 = vmatprep.subr.mxu0 0.0
    %380 = vmatpush1.msra.mxu0 0.0
    %381 = vmatprep.subr.mxu0 0.0
    %382 = vmatpush1.msra.mxu0 0.0
    %383 = vmatprep.mubr.f32.mxu0 0.0
    %384 = vmatmul.mubr.f32.gmra.mrb[0].mxu0 %v300
    %v385 = vpop.f32.mrb[0].mxu0
    %v386 = vadd.f32 %v318, %v385
    %v387 = vpop.f32.mrb[0].mxu0
    %388 = vdwg.mxu0
    %vm389 = vcmask 31744
    %v390 = vsel %vm389, %v386, -inf
    %391 = vmax.xlane.f32.xlu0 %v390
    %v392 = vpop.xlane.xlu0 %391
    %v393 = vsub.f32 %v386, %v392
    %v394 = vmul.f32 %v393, 1.442695
    %v395 = vpow.pop %v394
    %v396 = vsel %vm389, %v395, 0.0
    %397 = vadd.xlane.f32.xlu0 %v396
    %v398 = vpop.xlane.xlu0 %397
    %v399 = vrcp.pop %v398
    %v400 = vmul.f32 %v395, %v399
    %v401 = vld [vmem:[#allocation14] sm:$0xf]
    %v403 = vsel %vm389, %v400, 0
    %vm405 = vcmask 1043456
    %v407 = vsel %vm405, %v401, 0
    %409 = vmatprep.subr.mxu0 0.0
    %410 = vmatpush1.msra.mxu0 %v407
    %411 = vmatprep.subr.mxu0 0.0
    %412 = vmatpush1.msra.mxu0 0.0
    %413 = vmatprep.subr.mxu0 0.0
    %414 = vmatpush1.msra.mxu0 0.0
    %415 = vmatprep.subr.mxu0 0.0
    %416 = vmatpush1.msra.mxu0 0.0
    %417 = vmatprep.subr.mxu0 0.0
    %418 = vmatpush1.msra.mxu0 0.0
    %419 = vmatprep.subr.mxu0 0.0
    %420 = vmatpush1.msra.mxu0 0.0
    %421 = vmatprep.subr.mxu0 0.0
    %422 = vmatpush1.msra.mxu0 0.0
    %423 = vmatprep.subr.mxu0 0.0
    %424 = vmatpush1.msra.mxu0 0.0
    %425 = vmatprep.subr.mxu0 0.0
    %426 = vmatpush1.msra.mxu0 0.0
    %427 = vmatprep.subr.mxu0 0.0
    %428 = vmatpush1.msra.mxu0 0.0
    %429 = vmatprep.subr.mxu0 0.0
    %430 = vmatpush1.msra.mxu0 0.0
    %431 = vmatprep.subr.mxu0 0.0
    %432 = vmatpush1.msra.mxu0 0.0
    %433 = vmatprep.subr.mxu0 0.0
    %434 = vmatpush1.msra.mxu0 0.0
    %435 = vmatprep.subr.mxu0 0.0
    %436 = vmatpush1.msra.mxu0 0.0
    %437 = vmatprep.subr.mxu0 0.0
    %438 = vmatpush1.msra.mxu0 0.0
    %439 = vmatprep.subr.mxu0 0.0
    %440 = vmatpush1.msra.mxu0 0.0
    %441 = vmatprep.subr.mxu0 0.0
    %442 = vmatpush1.msra.mxu0 0.0
    %443 = vmatprep.subr.mxu0 0.0
    %444 = vmatpush1.msra.mxu0 0.0
    %445 = vmatprep.subr.mxu0 0.0
    %446 = vmatpush1.msra.mxu0 0.0
    %447 = vmatprep.subr.mxu0 0.0
    %448 = vmatpush1.msra.mxu0 0.0
    %449 = vmatprep.subr.mxu0 0.0
    %450 = vmatpush1.msra.mxu0 0.0
    %451 = vmatprep.subr.mxu0 0.0
    %452 = vmatpush1.msra.mxu0 0.0
    %453 = vmatprep.subr.mxu0 0.0
    %454 = vmatpush1.msra.mxu0 0.0
    %455 = vmatprep.subr.mxu0 0.0
    %456 = vmatpush1.msra.mxu0 0.0
    %457 = vmatprep.subr.mxu0 0.0
    %458 = vmatpush1.msra.mxu0 0.0
    %459 = vmatprep.subr.mxu0 0.0
    %460 = vmatpush1.msra.mxu0 0.0
    %461 = vmatprep.subr.mxu0 0.0
    %462 = vmatpush1.msra.mxu0 0.0
    %463 = vmatprep.subr.mxu0 0.0
    %464 = vmatpush1.msra.mxu0 0.0
    %465 = vmatprep.subr.mxu0 0.0
    %466 = vmatpush1.msra.mxu0 0.0
    %467 = vmatprep.subr.mxu0 0.0
    %468 = vmatpush1.msra.mxu0 0.0
    %469 = vmatprep.subr.mxu0 0.0
    %470 = vmatpush1.msra.mxu0 0.0
    %471 = vmatprep.subr.mxu0 0.0
    %472 = vmatpush1.msra.mxu0 0.0
    %473 = vmatprep.mubr.f32.mxu0 0.0
    %474 = vmatmul.mubr.f32.gmra.mrb[0].mxu0 %v403
    %v475 = vpop.f32.mrb[0].mxu0
    %v476 = vadd.f32 0.0, %v475
    %v477 = vpop.f32.mrb[0].mxu0
    %478 = vdwg.mxu0
    %v479 = vmul.f32 %v476, %v119
    %480 = vst [vmem:[#allocation15] sm:$0xff] %v479
    // Predicated region
    $region62: #{knowmix_forward.1} parent=1 // pred_check
      _
    $region63: #{knowmix_forward.1} parent=1 // pred_check_branch
      %482 = sbr.rel (0) target = $region65
    $region64: #{knowmix_forward.1} parent=1 // pred_region
      %s484 = ssub.s32 128, 128
      %485 = vsyncadd [#allocation5], %s484
      %s487 = sshll.u32 [#allocation15], 4
      %s488 = int_to_ptr.vmem [resolvable:$true] %s487
      %490 = dma.vmem_to_hbm [thread:$0]  %s488, 128, %s8, [#allocation5]
    $region65: #{knowmix_forward.1} parent=1 // pred_fallthru
      _
    // Predicated region
    $region66: #{knowmix_forward.1} parent=1 // pred_check
      _
    $region67: #{knowmix_forward.1} parent=1 // pred_check_branch
      %492 = sbr.rel (0) target = $region69
    $region68: #{knowmix_forward.1} parent=1 // pred_region
      %493 = dma.done [#allocation5], 128
    $region69: #{knowmix_forward.1} parent=1 // pred_fallthru
      _
    %494 = vsyncpa [#allocation4], 1
    %495 = vsyncpa [#allocation7], 1
    %496 = vsyncpa [#allocation10], 1
    %497 = vsyncpa [#allocation13], 1
    %498 = vsyncpa [#allocation5], 1

</llo_original>
